<compile_context>
chip_gen: v5e
topology: v5e:2x2
jax: 0.10.0
libtpu: 0.0.40
codegen_flags: <defaults>
</compile_context>

<pallas_src>
import jax
import jax.numpy as jnp
from jax.experimental import pallas as pl
from jax.experimental.pallas import tpu as pltpu


# ----------------------------------------------------------------------------
# Kernel 1: biased pairwise distances  d'[b,i,j] = ||x_bj||^2 - 2 <x_bi, x_bj>
# (true squared distance minus the per-row constant ||x_bi||^2 -> identical
#  per-row top-k ordering; padded columns carry +inf via the sqj input)
# ----------------------------------------------------------------------------
def pdist_kernel(sqj_ref, xti_ref, xtj_ref, d_ref):
    # xti: (C, TI)  xtj: (C, TJ)  -> Gram (TI, TJ) via leading-dim contraction;
    # both matmul operands and the output block are lane-dense.
    g = jax.lax.dot_general(
        xti_ref[0], xtj_ref[0], (((0,), (0,)), ((), ())),
        preferred_element_type=jnp.float32)                 # (TI, TJ)
    d_ref[0] = sqj_ref[0] - 2.0 * g                         # (1,TJ)+(TI,TJ)


def _pick_tile(n, candidates):
    for c in candidates:
        if n % c == 0:
            return c
    return n


def pairwise_biased_dists(x_pad, n_valid):
    """x_pad: (B, N_pad, C) f32, N_pad % 128 == 0, rows >= n_valid are zero.
    Returns (B, N_pad, N_pad); padded columns are +inf."""
    B, Np, C = x_pad.shape
    xt = jnp.transpose(x_pad, (0, 2, 1))                    # (B, C, Np) lane-dense
    sq = jnp.sum(x_pad * x_pad, axis=-1)                    # (B, Np)
    if n_valid != Np:
        # Padded columns must never be selected as neighbours.
        sq = jnp.where(jnp.arange(Np) >= n_valid, jnp.inf, sq)
    sqj = sq[:, None, :]                                    # (B, 1, Np)

    ti = _pick_tile(Np, (1024, 512, 256, 128))              # row tile
    tj = _pick_tile(Np, (512, 256, 128))                    # lane-dense col tile

    # TODO(synk): for very large N, fuse a running per-row top-K accumulator over
    # the j tiles (mark j "arbitrary") or emit bf16 distances so the (B,N,N)
    # matrix never round-trips HBM in f32; kept f32 + lax.top_k to preserve
    # exact neighbour selection.
    return pl.pallas_call(
        pdist_kernel,
        out_shape=jax.ShapeDtypeStruct((B, Np, Np), jnp.float32),
        grid=(B, Np // ti, Np // tj),
        in_specs=[
            pl.BlockSpec((1, 1, tj), lambda b, i, j: (b, 0, j)),   # ||x_j||^2 (+inf mask)
            pl.BlockSpec((1, C, ti), lambda b, i, j: (b, 0, i)),   # x^T (rows)
            pl.BlockSpec((1, C, tj), lambda b, i, j: (b, 0, j)),   # x^T (cols)
        ],
        out_specs=pl.BlockSpec((1, ti, tj), lambda b, i, j: (b, i, j)),
        compiler_params=pltpu.CompilerParams(
            dimension_semantics=("parallel", "parallel", "parallel"),
            vmem_limit_bytes=32 * 1024 * 1024),
    )(sqj, xt, xt)


# ----------------------------------------------------------------------------
# Kernel 2: per-point MLP, channels-first / lane-dense, K already collapsed
#   inputs : q    (2C, TM)   = x_i @ ((W1a+W1b)*s1) + folded bias
#            rmin (2C, TM)   = min_k [ x_{j(i,k)} @ (W1b*s1) ]
#            w2   (Cout, 2C) = W2 * s2   (BN2 folded)
#            t2   (Cout, 1)  = b2*s2 + t2
#   output : (Cout, TM)
# ----------------------------------------------------------------------------
def arpe_mlp_kernel(q_ref, rmin_ref, w2_ref, t2_ref, o_ref):
    # max_k(q - r_k) == q - min_k(r_k): K axis collapsed in the wrapper.
    m = q_ref[...] - rmin_ref[...]                          # (2C, TM)
    # ELU is monotone -> applied once after the max.  Clamp expm1's argument so
    # the discarded positive branch never produces inf.
    m = jnp.where(m > 0, m, jnp.expm1(jnp.minimum(m, 0.0)))
    # lin2 (+ folded bn2/bias) + ELU; output stays lane-dense (Cout, TM).
    g = jax.lax.dot_general(
        w2_ref[...], m, (((1,), (0,)), ((), ())),
        preferred_element_type=jnp.float32)                 # (Cout, TM)
    g = g + t2_ref[...]
    o_ref[...] = jnp.where(g > 0, g,
                           jnp.expm1(jnp.minimum(g, 0.0))).astype(o_ref.dtype)


def arpe_forward(x, params, k=32, tile_m=4096, channels_first_out=False):
    """ARPE forward. x: (B, N, C) float32 -> (B, N, Cout) (or (Cout, B, N))."""
    B, N, C = x.shape
    K = min(k, N)
    C2 = 2 * C
    Cout = params["w2f"].shape[0]

    # --- KNN: Pallas pdist + XLA top-k (self included, as in knn_points) -----
    N_pad = pl.cdiv(N, 128) * 128
    x_pd = jnp.pad(x, ((0, 0), (0, N_pad - N), (0, 0))) if N_pad != N else x
    d = pairwise_biased_dists(x_pd, N)                      # (B, N_pad, N_pad)
    # TODO(synk): top-k neighbour selection has no clean Pallas TPU primitive;
    # done with lax.top_k in plain JAX.
    idx = jax.lax.top_k(-d[:, :N, :], K)[1]                 # (B, N, K) int32

    # --- hoist lin1+bn1 through the gather, collapse K via min ---------------
    M = B * N
    x_flat = x.reshape(M, C)
    q = x_flat @ params["wq"] + params["bq"]                # (M, 2C)
    r = x_flat @ params["wr"]                               # (M, 2C)
    idx_global = (idx + jnp.arange(B, dtype=idx.dtype)[:, None, None] * N
                  ).reshape(-1)
    # max_k elu(q_i - r_{j(i,k)}) == elu(q_i - min_k r_{j(i,k)}) (exact).
    rmin = jnp.take(r, idx_global, axis=0).reshape(M, K, C2).min(axis=1)  # (M, 2C)

    # --- channels-first, lane-dense layout (wrapper-side plumbing) -----------
    # TODO(synk): on v6e/v7x, q/rmin could be fed as bf16 (upcast in-kernel) to
    # halve the remaining input DMA; kept f32 to preserve exact semantics.
    q_t = q.T                                               # (2C, M)
    rmin_t = rmin.T                                         # (2C, M)

    m128 = pl.cdiv(M, 128) * 128
    tm = min(max(128, (tile_m // 128) * 128), m128)         # lane multiple of 128
    # v7x: keep >= 2 grid steps so the single "parallel" axis shards onto both TCs.
    if m128 // tm < 2 and m128 >= 256:
        tm = max(128, (m128 // 256) * 128)
    M_pad = pl.cdiv(M, tm) * tm
    pad = M_pad - M
    if pad:
        q_t = jnp.pad(q_t, ((0, 0), (0, pad)))
        rmin_t = jnp.pad(rmin_t, ((0, 0), (0, pad)))

    out_t = pl.pallas_call(
        arpe_mlp_kernel,
        out_shape=jax.ShapeDtypeStruct((Cout, M_pad), jnp.float32),
        grid=(M_pad // tm,),
        in_specs=[
            pl.BlockSpec((C2, tm), lambda i: (0, i)),       # q
            pl.BlockSpec((C2, tm), lambda i: (0, i)),       # min_k r
            pl.BlockSpec((Cout, C2), lambda i: (0, 0)),     # folded W2
            pl.BlockSpec((Cout, 1), lambda i: (0, 0)),      # folded bias2
        ],
        out_specs=pl.BlockSpec((Cout, tm), lambda i: (0, i)),
        compiler_params=pltpu.CompilerParams(
            dimension_semantics=("parallel",),
            vmem_limit_bytes=32 * 1024 * 1024),
    )(q_t, rmin_t, params["w2f"], params["t2f"])

    out_t = out_t[:, :M]                                    # drop padded lanes
    if channels_first_out:
        # Lane-dense layout kept end-to-end (no extra transpose pass).
        return out_t.reshape(Cout, B, N)
    return out_t.T.reshape(B, N, Cout)


# ----------------------------------------------------------------------------
# Deterministic parameter construction + offline folding
# (shapes follow ARPE.__init__; BatchNorm is inference-mode, folded)
# ----------------------------------------------------------------------------
def make_params(key, in_channels=3, out_channels=32, eps=1e-5):
    C = in_channels
    C2 = 2 * C
    ks = jax.random.split(key, 12)

    # PyTorch Linear convention: W has shape (out, in), y = x @ W.T + b.
    W1 = 0.3 * jax.random.normal(ks[0], (C2, C2), jnp.float32)
    b1 = 0.1 * jax.random.normal(ks[1], (C2,), jnp.float32)
    W2 = 0.3 * jax.random.normal(ks[2], (out_channels, C2), jnp.float32)
    b2 = 0.1 * jax.random.normal(ks[3], (out_channels,), jnp.float32)

    # BatchNorm1d params + running stats (inference mode).
    # TODO(synk): training-mode BN (batch statistics) not implemented; folded
    # inference-mode BN is used instead.
    g1 = 1.0 + 0.1 * jax.random.normal(ks[4], (C2,), jnp.float32)
    be1 = 0.1 * jax.random.normal(ks[5], (C2,), jnp.float32)
    mu1 = 0.05 * jax.random.normal(ks[6], (C2,), jnp.float32)
    var1 = 1.0 + 0.1 * jax.random.uniform(ks[7], (C2,), jnp.float32)
    g2 = 1.0 + 0.1 * jax.random.normal(ks[8], (out_channels,), jnp.float32)
    be2 = 0.1 * jax.random.normal(ks[9], (out_channels,), jnp.float32)
    mu2 = 0.05 * jax.random.normal(ks[10], (out_channels,), jnp.float32)
    var2 = 1.0 + 0.1 * jax.random.uniform(ks[11], (out_channels,), jnp.float32)

    s1 = g1 / jnp.sqrt(var1 + eps)
    t1 = be1 - mu1 * s1
    s2 = g2 / jnp.sqrt(var2 + eps)
    t2 = be2 - mu2 * s2

    W1_io = W1.T                    # (in=2C, out=2C)
    w1a = W1_io[:C]                 # (C, 2C): multiplies x_i
    w1b = W1_io[C:]                 # (C, 2C): multiplies (x_i - x_j)

    # Fold BN1 + bias and hoist W1b through the gather:  h_{i,j} = q_i - r_j
    wq = (w1a + w1b) * s1[None, :]            # (C, 2C)
    bq = b1 * s1 + t1                         # (2C,)
    wr = w1b * s1[None, :]                    # (C, 2C)

    # Fold BN2 + bias into lin2:
    w2f = W2 * s2[:, None]                    # (Cout, 2C)
    t2f = (b2 * s2 + t2).reshape(out_channels, 1)  # (Cout, 1)

    return dict(wq=wq, bq=bq, wr=wr, w2f=w2f, t2f=t2f)


if __name__ == "__main__":
    key = jax.random.PRNGKey(0)
    k_x, k_p = jax.random.split(key)

    B, N, C, Cout = 2, 64, 3, 32          # small shapes; K = min(32, N) = 32
    x = jax.random.normal(k_x, (B, N, C), jnp.float32)
    params = make_params(k_p, in_channels=C, out_channels=Cout)

    out = arpe_forward(x, params, k=32)
    out = jax.block_until_ready(out)
    assert out.shape == (B, N, Cout)
    assert bool(jnp.all(jnp.isfinite(out)))
    print("KERNEL_OK")
</pallas_src>

<mosaic_0001>
module attributes {stable_mosaic.version = 11 : i64} {
  func.func @pdist_kernel(%arg0: i32, %arg1: i32, %arg2: i32, %arg3: memref<1x1x128xf32, #tpu.memory_space<vmem>>, %arg4: memref<1x3x128xf32, #tpu.memory_space<vmem>>, %arg5: memref<1x3x128xf32, #tpu.memory_space<vmem>>, %arg6: memref<1x128x128xf32, #tpu.memory_space<vmem>>) attributes {dimension_semantics = [#tpu.dimension_semantics<parallel>, #tpu.dimension_semantics<parallel>, #tpu.dimension_semantics<parallel>], iteration_bounds = array<i64: 2, 1, 1>, scalar_prefetch = 0 : i64, scratch_operands = 0 : i64, tpu.core_type = #tpu.core_type<tc>, window_params = [{transform_indices = @transform_0, window_bounds = array<i64: 1, 1, 128>}, {transform_indices = @transform_1, window_bounds = array<i64: 1, 3, 128>}, {transform_indices = @transform_2, window_bounds = array<i64: 1, 3, 128>}, {transform_indices = @transform_3, window_bounds = array<i64: 1, 128, 128>}]} {
    %c0 = arith.constant 0 : index
    %c0_0 = arith.constant 0 : index
    %c0_1 = arith.constant 0 : index
    %0 = vector.load %arg4[%c0, %c0_0, %c0_1] : memref<1x3x128xf32, #tpu.memory_space<vmem>>, vector<1x3x128xf32>
    %1 = vector.shape_cast %0 : vector<1x3x128xf32> to vector<3x128xf32>
    %c0_2 = arith.constant 0 : index
    %c0_3 = arith.constant 0 : index
    %c0_4 = arith.constant 0 : index
    %2 = vector.load %arg5[%c0_2, %c0_3, %c0_4] : memref<1x3x128xf32, #tpu.memory_space<vmem>>, vector<1x3x128xf32>
    %3 = vector.shape_cast %2 : vector<1x3x128xf32> to vector<3x128xf32>
    %cst = arith.constant dense<0.000000e+00> : vector<128x128xf32>
    %4 = tpu.matmul %1, %3, %cst {dimension_numbers = #tpu.dot_dimension_numbers<[0], [0], [1], [1], [0, 1, 1, 1], [], []>} : vector<3x128xf32>, vector<3x128xf32>, vector<128x128xf32> -> vector<128x128xf32>
    %c0_5 = arith.constant 0 : index
    %c0_6 = arith.constant 0 : index
    %c0_7 = arith.constant 0 : index
    %5 = vector.load %arg3[%c0_5, %c0_6, %c0_7] : memref<1x1x128xf32, #tpu.memory_space<vmem>>, vector<1x1x128xf32>
    %6 = vector.shape_cast %5 : vector<1x1x128xf32> to vector<1x128xf32>
    %cst_8 = arith.constant 2.000000e+00 : f32
    %7 = vector.broadcast %cst_8 : f32 to vector<128x128xf32>
    %8 = arith.mulf %7, %4 : vector<128x128xf32>
    %9 = vector.broadcast %6 : vector<1x128xf32> to vector<128x128xf32>
    %10 = arith.subf %9, %8 : vector<128x128xf32>
    %c0_9 = arith.constant 0 : index
    %c0_10 = arith.constant 0 : index
    %c0_11 = arith.constant 0 : index
    %11 = vector.load %arg6[%c0_9, %c0_10, %c0_11] : memref<1x128x128xf32, #tpu.memory_space<vmem>>, vector<1x128x128xf32>
    %12 = vector.shape_cast %11 : vector<1x128x128xf32> to vector<128x128xf32>
    %13 = vector.shape_cast %10 : vector<128x128xf32> to vector<1x128x128xf32>
    tpu.vector_store %arg6[%c0_9, %c0_10, %c0_11], %13 {strides = array<i32>} : memref<1x128x128xf32, #tpu.memory_space<vmem>>, vector<1x128x128xf32>,
    return
  }
  func.func @transform_0(%arg0: i32, %arg1: i32, %arg2: i32) -> (i32, i32, i32) {
    %c0_i32 = arith.constant 0 : i32
    %c0_i32_0 = arith.constant 0 : i32
    return %arg0, %c0_i32, %arg2 : i32, i32, i32
  }
  func.func @transform_1(%arg0: i32, %arg1: i32, %arg2: i32) -> (i32, i32, i32) {
    %c0_i32 = arith.constant 0 : i32
    %c0_i32_0 = arith.constant 0 : i32
    return %arg0, %c0_i32, %arg1 : i32, i32, i32
  }
  func.func @transform_2(%arg0: i32, %arg1: i32, %arg2: i32) -> (i32, i32, i32) {
    %c0_i32 = arith.constant 0 : i32
    %c0_i32_0 = arith.constant 0 : i32
    return %arg0, %c0_i32, %arg2 : i32, i32, i32
  }
  func.func @transform_3(%arg0: i32, %arg1: i32, %arg2: i32) -> (i32, i32, i32) {
    %c0_i32 = arith.constant 0 : i32
    return %arg0, %arg1, %arg2 : i32, i32, i32
  }
}

</mosaic_0001>

<llo_original>
// kernel: tpu_custom_call.1
$region0: #{tpu_custom_call.1}
  #allocation0 [shape = 'u32[]', space=smem, size = 0x4, offset = 0x4, fixed_abs, tag = 'smem constant byte address 0x4 - core index']
  #allocation1 [shape = 'u32[72,128]{1,0:T(1,128)}', space=vmem, size = 0x9000, scoped, tag = 'internal scratch']
  %s0 = inlined_call_operand.vmem [shape: f32[2,1,128], index: 0, kind: input, shape index: {}]
  %s1 = inlined_call_operand.vmem [shape: f32[2,3,128], index: 1, kind: input, shape index: {}]
  %s2 = inlined_call_operand.vmem [shape: f32[2,3,128], index: 2, kind: input, shape index: {}]
  %s3 = inlined_call_operand.hbm [shape: f32[2,128,128], index: 3, kind: output, shape index: {}]
  %s4 = sld [smem:[#allocation0]]
  $region45: #{tpu_custom_call.1} parent=0
    _
  %s6 = ssub.s32 1, %s4
  %s7 = scalar_select 0, %s6, %s4
  $region1: #{tpu_custom_call.1} parent=0
    #allocation2 [shape = 'u8[131072]{0}', space=vmem, size = 0x20000, scoped, tag = 'output window, operand 0']
    #allocation3 [shape = 's32[2]{0}', space=sflag, size = 0x8, scoped, tag = 'scoped memory for tpu_custom_call.1']
    %8 = vsyncpa [#allocation3], 0
    %s9 = scalar_lea.sflag [#allocation3], 1
    %10 = vsyncpa %s9, 0
    loop: start=0, step=1, limit=4
    $region2: #{tpu_custom_call.1} parent=1 // loop_pre_header
      _
    $region3: #{tpu_custom_call.1} parent=1 // loop_header
      %s12 = sphi 0, %s16
      %p13 = scmp.ge.s32.totalorder %s12, 4
      %s19 = sphi 0, %s38
      %s20 = sphi 0, %s34
      %s21 = sphi 0, %s30
      %s22 = sphi 0, %s19
      %s23 = sphi 0, %s20
      %s24 = sphi 0, %s21
      %s25 = sphi 0, %s22
      %s26 = sphi 0, %s23
      %s27 = sphi 0, %s24
      %s43 = sphi 0, %s45
      %s46 = sphi 0, %s43
      %s47 = sphi 0, %s46
      %s63 = sphi 0, %s47
      %s71 = sphi 0, %s73
      %s74 = sphi 0, %s71
      %s75 = sphi 0, %s74
      %s91 = sphi 0, %s75
      %s99 = sphi 0, %s101
      %s102 = sphi 0, %s99
      %s103 = sphi 0, %s102
      %s119 = sphi 0, %s103
      %s129 = sphi 0, %s131
      %s132 = sphi 0, %s129
      %s133 = sphi 0, %s132
      %s149 = sphi 0, %s133
    $region4: #{tpu_custom_call.1} parent=1 // loop_header_branch
      %15 = sbr.rel (%p13) target = $region8
    $region5: #{tpu_custom_call.1} parent=1 // loop_body
      %s17 = ssub.s32 %s12, 1
      %s18 = ssub.s32 %s12, 2
      %s28 = sadd.s32 1, %s21
      %p29 = scmp.ge.s32.totalorder %s28, 1
      %s30 = scalar_select %p29, 0, %s28
      %s31 = sadd.s32 1, %s20
      %s32 = scalar_select %p29, %s31, %s20
      %p33 = scmp.ge.s32.totalorder %s32, 1
      %s34 = scalar_select %p33, 0, %s32
      %s35 = sadd.s32 1, %s19
      %s36 = scalar_select %p33, %s35, %s19
      %p37 = scmp.ge.s32.totalorder %s36, 2
      %s38 = scalar_select %p37, 0, %s36
      %s39 = ssub.s32 %s19, %s38
      %s40 = ssub.s32 %s21, %s30
      %s41 = sor.u32 %s39, %s40
      %p42 = scmp.eq.s32.totalorder %s41, 0
      %s44 = sadd.s32 %s43, 1
      %s45 = scalar_select %p42, %s43, %s44
      %p48 = pneg %p42
      %p49 = scmp.eq.s32.totalorder %s12, 1
      %p50 = por %p48, %p49
      %p51 = scmp.ne.s32.totalorder %s43, %s46
      %p52 = scmp.eq.s32.totalorder %s12, 0
      %p53 = por %p51, %p52
      %p54 = scmp.ne.s32.totalorder %s43, %s46
      %p55 = scmp.eq.s32.totalorder %s17, 1
      %p56 = por %p54, %p55
      %p57 = scmp.ne.s32.totalorder %s46, %s47
      %p58 = scmp.eq.s32.totalorder %s17, 0
      %p59 = por %p57, %p58
      %p60 = scmp.ne.s32.totalorder %s46, %s47
      %p61 = scmp.eq.s32.totalorder %s18, 1
      %p62 = por %p60, %p61
      %p64 = scmp.ne.s32.totalorder %s47, %s63
      %p65 = scmp.eq.s32.totalorder %s18, 0
      %p66 = por %p64, %p65
      %s67 = ssub.s32 %s19, %s38
      %s68 = ssub.s32 %s20, %s34
      %s69 = sor.u32 %s67, %s68
      %p70 = scmp.eq.s32.totalorder %s69, 0
      %s72 = sadd.s32 %s71, 1
      %s73 = scalar_select %p70, %s71, %s72
      %p76 = pneg %p70
      %p77 = scmp.eq.s32.totalorder %s12, 1
      %p78 = por %p76, %p77
      %p79 = scmp.ne.s32.totalorder %s71, %s74
      %p80 = scmp.eq.s32.totalorder %s12, 0
      %p81 = por %p79, %p80
      %p82 = scmp.ne.s32.totalorder %s71, %s74
      %p83 = scmp.eq.s32.totalorder %s17, 1
      %p84 = por %p82, %p83
      %p85 = scmp.ne.s32.totalorder %s74, %s75
      %p86 = scmp.eq.s32.totalorder %s17, 0
      %p87 = por %p85, %p86
      %p88 = scmp.ne.s32.totalorder %s74, %s75
      %p89 = scmp.eq.s32.totalorder %s18, 1
      %p90 = por %p88, %p89
      %p92 = scmp.ne.s32.totalorder %s75, %s91
      %p93 = scmp.eq.s32.totalorder %s18, 0
      %p94 = por %p92, %p93
      %s95 = ssub.s32 %s19, %s38
      %s96 = ssub.s32 %s21, %s30
      %s97 = sor.u32 %s95, %s96
      %p98 = scmp.eq.s32.totalorder %s97, 0
      %s100 = sadd.s32 %s99, 1
      %s101 = scalar_select %p98, %s99, %s100
      %p104 = pneg %p98
      %p105 = scmp.eq.s32.totalorder %s12, 1
      %p106 = por %p104, %p105
      %p107 = scmp.ne.s32.totalorder %s99, %s102
      %p108 = scmp.eq.s32.totalorder %s12, 0
      %p109 = por %p107, %p108
      %p110 = scmp.ne.s32.totalorder %s99, %s102
      %p111 = scmp.eq.s32.totalorder %s17, 1
      %p112 = por %p110, %p111
      %p113 = scmp.ne.s32.totalorder %s102, %s103
      %p114 = scmp.eq.s32.totalorder %s17, 0
      %p115 = por %p113, %p114
      %p116 = scmp.ne.s32.totalorder %s102, %s103
      %p117 = scmp.eq.s32.totalorder %s18, 1
      %p118 = por %p116, %p117
      %p120 = scmp.ne.s32.totalorder %s103, %s119
      %p121 = scmp.eq.s32.totalorder %s18, 0
      %p122 = por %p120, %p121
      %s123 = ssub.s32 %s19, %s38
      %s124 = ssub.s32 %s20, %s34
      %s125 = sor.u32 %s123, %s124
      %s126 = ssub.s32 %s21, %s30
      %s127 = sor.u32 %s125, %s126
      %p128 = scmp.eq.s32.totalorder %s127, 0
      %s130 = sadd.s32 %s129, 1
      %s131 = scalar_select %p128, %s129, %s130
      %p134 = pneg %p128
      %p135 = scmp.eq.s32.totalorder %s12, 1
      %p136 = por %p134, %p135
      %p137 = scmp.ne.s32.totalorder %s129, %s132
      %p138 = scmp.eq.s32.totalorder %s12, 0
      %p139 = por %p137, %p138
      %p140 = scmp.ne.s32.totalorder %s129, %s132
      %p141 = scmp.eq.s32.totalorder %s17, 1
      %p142 = por %p140, %p141
      %p143 = scmp.ne.s32.totalorder %s132, %s133
      %p144 = scmp.eq.s32.totalorder %s17, 0
      %p145 = por %p143, %p144
      %p146 = scmp.ne.s32.totalorder %s132, %s133
      %p147 = scmp.eq.s32.totalorder %s18, 1
      %p148 = por %p146, %p147
      %p150 = scmp.ne.s32.totalorder %s133, %s149
      %p151 = scmp.eq.s32.totalorder %s18, 0
      %p152 = por %p150, %p151
      %p153 = scmp.le.s32.totalorder 1, %s12
      %p154 = scmp.lt.s32.totalorder %s12, 3
      %p155 = pnand %p153, %p154
      %p156 = pneg %p155
      // Predicated region
      $region9: #{tpu_custom_call.1} parent=5 // pred_check
        _
      $region10: #{tpu_custom_call.1} parent=5 // pred_check_branch
        %158 = sbr.rel (%p155) target = $region12
      $region11: #{tpu_custom_call.1} parent=5 // pred_region
        %s159 = ssub.s32 %s12, 1
      $region12: #{tpu_custom_call.1} parent=5 // pred_fallthru
        _
      %p160 = scmp.lt.s32.totalorder %s12, 2
      // Predicated region
      $region13: #{tpu_custom_call.1} parent=5 // pred_check
        %p161 = pneg %p160
      $region14: #{tpu_custom_call.1} parent=5 // pred_check_branch
        %163 = sbr.rel (%p161) target = $region16
      $region15: #{tpu_custom_call.1} parent=5 // pred_region
        // Predicated region
        $region17: #{tpu_custom_call.1} parent=15 // pred_check
          %p164 = pneg %p53
        $region18: #{tpu_custom_call.1} parent=15 // pred_check_branch
          %166 = sbr.rel (%p164) target = $region20
        $region19: #{tpu_custom_call.1} parent=15 // pred_region
          %p167 = scmp.lt.s32.totalorder %s19, 1
          %s168 = scalar_select %p167, %s19, 1
          %p169 = scmp.lt.s32.totalorder %s21, 0
          %s170 = scalar_select %p169, %s21, 0
          %s171 = sadd.s32 %s170, %s168
          %s172 = scalar_lea.vmem %s0, %s171
        $region20: #{tpu_custom_call.1} parent=15 // pred_fallthru
          _
        // Predicated region
        $region21: #{tpu_custom_call.1} parent=15 // pred_check
          %p173 = pneg %p81
        $region22: #{tpu_custom_call.1} parent=15 // pred_check_branch
          %175 = sbr.rel (%p173) target = $region24
        $region23: #{tpu_custom_call.1} parent=15 // pred_region
          %p176 = scmp.lt.s32.totalorder %s19, 1
          %s177 = scalar_select %p176, %s19, 1
          %p178 = scmp.lt.s32.totalorder %s20, 0
          %s179 = scalar_select %p178, %s20, 0
          %s180 = sadd.s32 %s179, %s177
          %s181 = smul.addr %s180, 4
          %s182 = scalar_lea.vmem %s1, %s181
        $region24: #{tpu_custom_call.1} parent=15 // pred_fallthru
          _
        // Predicated region
        $region25: #{tpu_custom_call.1} parent=15 // pred_check
          %p183 = pneg %p109
        $region26: #{tpu_custom_call.1} parent=15 // pred_check_branch
          %185 = sbr.rel (%p183) target = $region28
        $region27: #{tpu_custom_call.1} parent=15 // pred_region
          %p186 = scmp.lt.s32.totalorder %s19, 1
          %s187 = scalar_select %p186, %s19, 1
          %p188 = scmp.lt.s32.totalorder %s21, 0
          %s189 = scalar_select %p188, %s21, 0
          %s190 = sadd.s32 %s189, %s187
          %s191 = smul.addr %s190, 4
          %s192 = scalar_lea.vmem %s2, %s191
        $region28: #{tpu_custom_call.1} parent=15 // pred_fallthru
          _
      $region16: #{tpu_custom_call.1} parent=5 // pred_fallthru
        _
      %p193 = scmp.le.s32.totalorder 1, %s12
      %p194 = scmp.lt.s32.totalorder %s12, 3
      %p195 = pnand %p193, %p194
      %p196 = pneg %p195
      // Predicated region
      $region29: #{tpu_custom_call.1} parent=5 // pred_check
        _
      $region30: #{tpu_custom_call.1} parent=5 // pred_check_branch
        %198 = sbr.rel (%p195) target = $region32
      $region31: #{tpu_custom_call.1} parent=5 // pred_region
        %s199 = ssub.s32 %s12, 1
        %p200 = scmp.lt.s32.totalorder %s22, 1
        %s201 = scalar_select %p200, %s22, 1
        %p202 = scmp.lt.s32.totalorder %s24, 0
        %s203 = scalar_select %p202, %s24, 0
        %s204 = sadd.s32 %s203, %s201
        %s205 = scalar_lea.vmem %s0, %s204
        %p206 = pneg %p59
        %p207 = pneg %p56
        %p208 = scmp.lt.s32.totalorder %s22, 1
        %s209 = scalar_select %p208, %s22, 1
        %p210 = scmp.lt.s32.totalorder %s23, 0
        %s211 = scalar_select %p210, %s23, 0
        %s212 = sadd.s32 %s211, %s209
        %s213 = smul.addr %s212, 4
        %s214 = scalar_lea.vmem %s1, %s213
        %p215 = pneg %p87
        %p216 = pneg %p84
        %p217 = scmp.lt.s32.totalorder %s22, 1
        %s218 = scalar_select %p217, %s22, 1
        %p219 = scmp.lt.s32.totalorder %s24, 0
        %s220 = scalar_select %p219, %s24, 0
        %s221 = sadd.s32 %s220, %s218
        %s222 = smul.addr %s221, 4
        %s223 = scalar_lea.vmem %s2, %s222
        %p224 = pneg %p115
        %p225 = pneg %p112
        %p226 = pneg %p145
        %p227 = pneg %p142
        %s228 = sand.u32 %s132, 1
        %s229 = scalar_lea.sflag [#allocation3], %s228
        %s230 = sand.u32 %s132, 1
        %s231 = smul.addr %s230, 128
        %s232 = scalar_lea.vmem [#allocation2], %s231
        %p233 = scmp.lt.s32.totalorder %s22, 1
        %s234 = scalar_select %p233, %s22, 1
        %p235 = scmp.lt.s32.totalorder %s24, 0
        %s236 = scalar_select %p235, %s24, 0
        %s237 = sadd.s32 %s236, %s234
        %s238 = scalar_lea.vmem %s0, %s237
        %p239 = scmp.lt.s32.totalorder %s22, 1
        %s240 = scalar_select %p239, %s22, 1
        %p241 = scmp.lt.s32.totalorder %s23, 0
        %s242 = scalar_select %p241, %s23, 0
        %s243 = sadd.s32 %s242, %s240
        %s244 = smul.addr %s243, 4
        %s245 = scalar_lea.vmem %s1, %s244
        %p246 = scmp.lt.s32.totalorder %s22, 1
        %s247 = scalar_select %p246, %s22, 1
        %p248 = scmp.lt.s32.totalorder %s24, 0
        %s249 = scalar_select %p248, %s24, 0
        %s250 = sadd.s32 %s249, %s247
        %s251 = smul.addr %s250, 4
        %s252 = scalar_lea.vmem %s2, %s251
        %s253 = smul.u32 16, %s23
        %v254 = vld [vmem:[%s245] sm:$0x7]
        %v255 = vld [vmem:[%s252] sm:$0x7]
        %256 = vxpose.xlu0.b32.start [1/16] %v254, 128
        %257 = vxpose.xlu0.b32.cont [2/16] 0.0, 128
        %258 = vxpose.xlu0.b32.cont [3/16] 0.0, 128
        %259 = vxpose.xlu0.b32.cont [4/16] 0.0, 128
        %260 = vxpose.xlu0.b32.cont [5/16] 0.0, 128
        %261 = vxpose.xlu0.b32.cont [6/16] 0.0, 128
        %262 = vxpose.xlu0.b32.cont [7/16] 0.0, 128
        %263 = vxpose.xlu0.b32.cont [8/16] 0.0, 128
        %264 = vxpose.xlu0.b32.cont [9/16] 0.0, 128
        %265 = vxpose.xlu0.b32.cont [10/16] 0.0, 128
        %266 = vxpose.xlu0.b32.cont [11/16] 0.0, 128
        %267 = vxpose.xlu0.b32.cont [12/16] 0.0, 128
        %268 = vxpose.xlu0.b32.cont [13/16] 0.0, 128
        %269 = vxpose.xlu0.b32.cont [14/16] 0.0, 128
        %270 = vxpose.xlu0.b32.cont [15/16] 0.0, 128
        %271 = vxpose.xlu0.b32.end [16/16] 0.0, 128
        %v272 = vpop.trf.xlu0
        %v273 = vpop.trf.xlu0
        %v274 = vpop.trf.xlu0
        %v275 = vpop.trf.xlu0
        %v276 = vpop.trf.xlu0
        %v277 = vpop.trf.xlu0
        %v278 = vpop.trf.xlu0
        %v279 = vpop.trf.xlu0
        %v280 = vpop.trf.xlu0
        %v281 = vpop.trf.xlu0
        %v282 = vpop.trf.xlu0
        %v283 = vpop.trf.xlu0
        %v284 = vpop.trf.xlu0
        %v285 = vpop.trf.xlu0
        %v286 = vpop.trf.xlu0
        %v287 = vpop.trf.xlu0
        %vm288 = vcmask 23552
        %v290 = vsel %vm288, %v272, 0
        %v293 = vsel %vm288, %v273, 0
        %v296 = vsel %vm288, %v274, 0
        %v299 = vsel %vm288, %v275, 0
        %v302 = vsel %vm288, %v276, 0
        %v305 = vsel %vm288, %v277, 0
        %v308 = vsel %vm288, %v278, 0
        %v311 = vsel %vm288, %v279, 0
        %v314 = vsel %vm288, %v280, 0
        %v317 = vsel %vm288, %v281, 0
        %v320 = vsel %vm288, %v282, 0
        %v323 = vsel %vm288, %v283, 0
        %v326 = vsel %vm288, %v284, 0
        %v329 = vsel %vm288, %v285, 0
        %v332 = vsel %vm288, %v286, 0
        %v335 = vsel %vm288, %v287, 0
        %vm337 = vcmask 1042432
        %v339 = vsel %vm337, %v255, 0
        %341 = vmatpush.msra.mxu0 0.0
        %342 = vmatpush.msra.mxu0 0.0
        %343 = vmatpush.msra.mxu0 0.0
        %344 = vmatpush.msra.mxu0 0.0
        %345 = vmatpush.msra.mxu0 0.0
        %346 = vmatpush.msra.mxu0 0.0
        %347 = vmatpush.msra.mxu0 0.0
        %348 = vmatpush.msra.mxu0 0.0
        %349 = vmatpush.msra.mxu0 0.0
        %350 = vmatpush.msra.mxu0 0.0
        %351 = vmatpush.msra.mxu0 0.0
        %352 = vmatpush.msra.mxu0 0.0
        %353 = vmatpush.msra.mxu0 0.0
        %354 = vmatpush.msra.mxu0 0.0
        %355 = vmatpush.msra.mxu0 0.0
        %356 = vmatpush.msra.mxu0 %v339
        %357 = vmatmul.f32.gmra.mxu0 %v290
        %v358 = vpop.f32.mrf.mxu0
        %v359 = vadd.f32 0.0, %v358
        %360 = vmatmul.f32.gmra.mxu0 %v293
        %v361 = vpop.f32.mrf.mxu0
        %v362 = vadd.f32 0.0, %v361
        %363 = vmatmul.f32.gmra.mxu0 %v296
        %v364 = vpop.f32.mrf.mxu0
        %v365 = vadd.f32 0.0, %v364
        %366 = vmatmul.f32.gmra.mxu0 %v299
        %v367 = vpop.f32.mrf.mxu0
        %v368 = vadd.f32 0.0, %v367
        %369 = vmatmul.f32.gmra.mxu0 %v302
        %v370 = vpop.f32.mrf.mxu0
        %v371 = vadd.f32 0.0, %v370
        %372 = vmatmul.f32.gmra.mxu0 %v305
        %v373 = vpop.f32.mrf.mxu0
        %v374 = vadd.f32 0.0, %v373
        %375 = vmatmul.f32.gmra.mxu0 %v308
        %v376 = vpop.f32.mrf.mxu0
        %v377 = vadd.f32 0.0, %v376
        %378 = vmatmul.f32.gmra.mxu0 %v311
        %v379 = vpop.f32.mrf.mxu0
        %v380 = vadd.f32 0.0, %v379
        %381 = vmatmul.f32.gmra.mxu0 %v314
        %v382 = vpop.f32.mrf.mxu0
        %v383 = vadd.f32 0.0, %v382
        %384 = vmatmul.f32.gmra.mxu0 %v317
        %v385 = vpop.f32.mrf.mxu0
        %v386 = vadd.f32 0.0, %v385
        %387 = vmatmul.f32.gmra.mxu0 %v320
        %v388 = vpop.f32.mrf.mxu0
        %v389 = vadd.f32 0.0, %v388
        %390 = vmatmul.f32.gmra.mxu0 %v323
        %v391 = vpop.f32.mrf.mxu0
        %v392 = vadd.f32 0.0, %v391
        %393 = vmatmul.f32.gmra.mxu0 %v326
        %v394 = vpop.f32.mrf.mxu0
        %v395 = vadd.f32 0.0, %v394
        %396 = vmatmul.f32.gmra.mxu0 %v329
        %v397 = vpop.f32.mrf.mxu0
        %v398 = vadd.f32 0.0, %v397
        %399 = vmatmul.f32.gmra.mxu0 %v332
        %v400 = vpop.f32.mrf.mxu0
        %v401 = vadd.f32 0.0, %v400
        %402 = vmatmul.f32.gmra.mxu0 %v335
        %v403 = vpop.f32.mrf.mxu0
        %v404 = vadd.f32 0.0, %v403
        %405 = vdwg.mxu0
        %v406 = vld [vmem:[%s238] sm:$0x1]
        %v407 = vmul.f32 %v359, 2.0
        %v408 = vmul.f32 %v362, 2.0
        %v409 = vmul.f32 %v365, 2.0
        %v410 = vmul.f32 %v368, 2.0
        %v411 = vmul.f32 %v371, 2.0
        %v412 = vmul.f32 %v374, 2.0
        %v413 = vmul.f32 %v377, 2.0
        %v414 = vmul.f32 %v380, 2.0
        %v415 = vmul.f32 %v383, 2.0
        %v416 = vmul.f32 %v386, 2.0
        %v417 = vmul.f32 %v389, 2.0
        %v418 = vmul.f32 %v392, 2.0
        %v419 = vmul.f32 %v395, 2.0
        %v420 = vmul.f32 %v398, 2.0
        %v421 = vmul.f32 %v401, 2.0
        %v422 = vmul.f32 %v404, 2.0
        %v424 = vperm.slane %v406, 0
        %v426 = vsub.f32 %v424, %v407
        %v427 = vsub.f32 %v424, %v408
        %v428 = vsub.f32 %v424, %v409
        %v429 = vsub.f32 %v424, %v410
        %v430 = vsub.f32 %v424, %v411
        %v431 = vsub.f32 %v424, %v412
        %v432 = vsub.f32 %v424, %v413
        %v433 = vsub.f32 %v424, %v414
        %v434 = vsub.f32 %v424, %v415
        %v435 = vsub.f32 %v424, %v416
        %v436 = vsub.f32 %v424, %v417
        %v437 = vsub.f32 %v424, %v418
        %v438 = vsub.f32 %v424, %v419
        %v439 = vsub.f32 %v424, %v420
        %v440 = vsub.f32 %v424, %v421
        %v441 = vsub.f32 %v424, %v422
        %442 = vst [vmem:[%s232] sm:$0xff] %v426
        %443 = vst [vmem:[%s232 + $0x8] sm:$0xff] %v427
        %444 = vst [vmem:[%s232 + $0x10] sm:$0xff] %v428
        %445 = vst [vmem:[%s232 + $0x18] sm:$0xff] %v429
        %446 = vst [vmem:[%s232 + $0x20] sm:$0xff] %v430
        %447 = vst [vmem:[%s232 + $0x28] sm:$0xff] %v431
        %448 = vst [vmem:[%s232 + $0x30] sm:$0xff] %v432
        %449 = vst [vmem:[%s232 + $0x38] sm:$0xff] %v433
        %450 = vst [vmem:[%s232 + $0x40] sm:$0xff] %v434
        %451 = vst [vmem:[%s232 + $0x48] sm:$0xff] %v435
        %452 = vst [vmem:[%s232 + $0x50] sm:$0xff] %v436
        %453 = vst [vmem:[%s232 + $0x58] sm:$0xff] %v437
        %454 = vst [vmem:[%s232 + $0x60] sm:$0xff] %v438
        %455 = vst [vmem:[%s232 + $0x68] sm:$0xff] %v439
        %456 = vst [vmem:[%s232 + $0x70] sm:$0xff] %v440
        %457 = vst [vmem:[%s232 + $0x78] sm:$0xff] %v441
        %s458 = sand.u32 %s132, 1
        %s459 = scalar_lea.sflag [#allocation3], %s458
        %s460 = sand.u32 %s132, 1
        %s461 = smul.addr %s460, 128
        %s462 = scalar_lea.vmem [#allocation2], %s461
        // Predicated region
        $region33: #{tpu_custom_call.1} parent=31 // pred_check
          %p463 = pneg %p142
        $region34: #{tpu_custom_call.1} parent=31 // pred_check_branch
          %465 = sbr.rel (%p463) target = $region36
        $region35: #{tpu_custom_call.1} parent=31 // pred_region
          %s466 = smul.u32 16, %s23
          %468 = vsyncadd %s459, 0
          %s469 = sadd.s32 %s24, %s466
          %s470 = smul.addr %s22, 16
          %s471 = sadd.s32 %s469, %s470
          %s472 = smul.addr %s471, 8
          %s473 = scalar_lea.hbm %s3, %s472
          %s474 = sshll.u32 %s462, 4
          %s475 = int_to_ptr.vmem [resolvable:$true] %s474
          %s476 = sshll.u32 %s473, 4
          %s477 = int_to_ptr.hbm [resolvable:$true] %s476
          %482 = dma.vmem_to_hbm [thread:$0]  %s475, 2048, %s477, %s459, 128, 128, 8
        $region36: #{tpu_custom_call.1} parent=31 // pred_fallthru
          _
      $region32: #{tpu_custom_call.1} parent=5 // pred_fallthru
        _
      %p483 = scmp.le.s32.totalorder 2, %s12
      // Predicated region
      $region37: #{tpu_custom_call.1} parent=5 // pred_check
        %p484 = pneg %p483
      $region38: #{tpu_custom_call.1} parent=5 // pred_check_branch
        %486 = sbr.rel (%p484) target = $region40
      $region39: #{tpu_custom_call.1} parent=5 // pred_region
        %s487 = ssub.s32 %s12, 2
        // Predicated region
        $region41: #{tpu_custom_call.1} parent=39 // pred_check
          %p488 = pneg %p148
        $region42: #{tpu_custom_call.1} parent=39 // pred_check_branch
          %490 = sbr.rel (%p488) target = $region44
        $region43: #{tpu_custom_call.1} parent=39 // pred_region
          %s491 = sand.u32 %s133, 1
          %s492 = scalar_lea.sflag [#allocation3], %s491
          %s493 = sand.u32 %s133, 1
          %s494 = smul.addr %s493, 128
          %s495 = scalar_lea.vmem [#allocation2], %s494
          %497 = dma.done %s492, 2048
        $region44: #{tpu_custom_call.1} parent=39 // pred_fallthru
          _
      $region40: #{tpu_custom_call.1} parent=5 // pred_fallthru
        _
    $region6: #{tpu_custom_call.1} parent=1 // loop_footer
      %s16 = sadd.s32 1, %s12
    $region7: #{tpu_custom_call.1} parent=1 // loop_footer_branch
      %11 = sbr.rel target = $region3
    $region8: #{tpu_custom_call.1} parent=1 // loop_exit
      _
    %498 = vsyncpa [#allocation3], 1
    %s499 = scalar_lea.sflag [#allocation3], 1
    %500 = vsyncpa %s499, 1

</llo_original>
